<compile_context>
chip_gen: v7x
topology: tpu7x:2x2x1
jax: 0.10.0
libtpu: 0.0.40
codegen_flags: <defaults>
</compile_context>

<pallas_src>
import functools
import math

import jax
import jax.numpy as jnp
from jax.experimental import pallas as pl
from jax.experimental.pallas import tpu as pltpu


def _round_up(x, m):
    return ((x + m - 1) // m) * m


def _gcn_kernel(adj_ref, x_ref, h0_ref, w_ref, *rest,
                alpha, theta, residual, compute_dtype):
    # adj_ref : (TM, TK)   adjacency tile                    (compute_dtype)
    # x_ref   : (TK, Fp)   K-slab of features                (compute_dtype)
    # h0_ref  : (TM, Fp)   rows of h0                        (f32)
    # w_ref   : (Fp, Fp)   weight                            (compute_dtype)
    # xres_ref: (TM, Fp)   rows of x for residual add        (f32, optional)
    # out_ref : (TM, Fp)
    # acc_ref : (TM, Fp)   f32 accumulator for hi = adj @ x
    if residual:
        xres_ref, out_ref, acc_ref = rest
    else:
        out_ref, acc_ref = rest
        xres_ref = None

    k = pl.program_id(1)

    @pl.when(k == 0)
    def _init():
        acc_ref[...] = jnp.zeros_like(acc_ref)

    # hi += adj_tile @ x_slab   (MXU, f32 accumulation)
    acc_ref[...] += jnp.dot(adj_ref[...], x_ref[...],
                            preferred_element_type=jnp.float32)

    @pl.when(k == pl.num_programs(1) - 1)
    def _finalize():
        hi = acc_ref[...]
        # support = (1 - alpha) * hi + alpha * h0   (VPU, f32)
        support = (1.0 - alpha) * hi + alpha * h0_ref[...].astype(jnp.float32)
        # out = theta * (support @ W) + (1 - theta) * support
        sw = jnp.dot(support.astype(compute_dtype), w_ref[...],
                     preferred_element_type=jnp.float32)
        out = theta * sw + (1.0 - theta) * support
        if residual:
            out = out + xres_ref[...].astype(jnp.float32)
        out_ref[...] = out.astype(out_ref.dtype)


def graph_convolution(x, adj, h0, weight, *, lamda, alpha, l,
                      residual=False, tile_m=256, tile_k=512,
                      compute_dtype=jnp.bfloat16):
    """Pallas implementation of GraphConvolution.forward (variant=False)."""
    # TODO(synk): variant=True branch (torch.cat([hi, h0], 1), 2*in_features
    # weight) not implemented; module default is variant=False.
    N, F = x.shape
    assert adj.shape == (N, N)
    assert h0.shape == (N, F)
    assert weight.shape == (F, F)

    theta = math.log(lamda / l + 1.0)
    out_dtype = x.dtype

    # ---- tile / padding selection -------------------------------------
    # Lane-dense feature dim.
    F_p = _round_up(F, 128)
    # K tile: multiple of 128 (lane dim of adj tile), no bigger than needed.
    tile_k = min(tile_k, _round_up(N, 128))
    tile_k = _round_up(tile_k, 128)
    # Row tile: must divide tile_k so a single N padding works for both axes.
    tile_m = min(tile_m, tile_k)
    if tile_k % tile_m != 0:
        tile_m = 128
    N_p = _round_up(N, tile_k)

    def pad2(a, rows, cols, dtype):
        a = a.astype(dtype)
        return jnp.pad(a, ((0, rows - a.shape[0]), (0, cols - a.shape[1])))

    adj_p = pad2(adj, N_p, N_p, compute_dtype)      # streamed matmul operand
    x_mm = pad2(x, N_p, F_p, compute_dtype)         # streamed matmul operand
    h0_p = pad2(h0, N_p, F_p, jnp.float32)          # f32 epilogue operand
    w_p = pad2(weight, F_p, F_p, compute_dtype)

    inputs = [adj_p, x_mm, h0_p, w_p]
    in_specs = [
        pl.BlockSpec((tile_m, tile_k), lambda i, k: (i, k)),   # adj tile
        pl.BlockSpec((tile_k, F_p), lambda i, k: (k, 0)),      # x K-slab
        pl.BlockSpec((tile_m, F_p), lambda i, k: (i, 0)),      # h0 rows
        pl.BlockSpec((F_p, F_p), lambda i, k: (0, 0)),         # weight (resident)
    ]
    if residual:
        x_res = pad2(x, N_p, F_p, jnp.float32)                 # f32 residual rows
        inputs.append(x_res)
        in_specs.append(pl.BlockSpec((tile_m, F_p), lambda i, k: (i, 0)))

    grid = (N_p // tile_m, N_p // tile_k)

    # ---- VMEM budget (double-buffered I/O + f32 accumulator) ----------
    mm_itm = jnp.dtype(compute_dtype).itemsize
    out_itm = jnp.dtype(out_dtype).itemsize
    io_bytes = 2 * (tile_m * tile_k * mm_itm       # adj tile
                    + tile_k * F_p * mm_itm        # x slab
                    + tile_m * F_p * 4             # h0 rows
                    + F_p * F_p * mm_itm           # weight
                    + tile_m * F_p * out_itm)      # out tile
    if residual:
        io_bytes += 2 * tile_m * F_p * 4
    acc_bytes = tile_m * F_p * 4
    vmem_limit = int(min(1.5 * (io_bytes + acc_bytes) + (4 << 20), 64 << 20))

    cost = pl.CostEstimate(
        flops=2 * N_p * N_p * F_p + 2 * N_p * F_p * F_p + 6 * N_p * F_p,
        transcendentals=0,
        bytes_accessed=int(adj_p.size * mm_itm + x_mm.size * mm_itm
                           + h0_p.size * 4 + w_p.size * mm_itm
                           + N_p * F_p * out_itm
                           + (N_p * F_p * 4 if residual else 0)),
    )

    kernel = functools.partial(
        _gcn_kernel,
        alpha=float(alpha),
        theta=float(theta),
        residual=bool(residual),
        compute_dtype=compute_dtype,
    )

    out_padded = pl.pallas_call(
        kernel,
        out_shape=jax.ShapeDtypeStruct((N_p, F_p), out_dtype),
        grid_spec=pltpu.PrefetchScalarGridSpec(
            num_scalar_prefetch=0,
            grid=grid,
            in_specs=in_specs,
            out_specs=pl.BlockSpec((tile_m, F_p), lambda i, k: (i, 0)),
            scratch_shapes=[pltpu.VMEM((tile_m, F_p), jnp.float32)],
        ),
        compiler_params=pltpu.CompilerParams(
            dimension_semantics=("parallel", "arbitrary"),
            vmem_limit_bytes=vmem_limit,
        ),
        cost_estimate=cost,
    )(*inputs)

    return out_padded[:N, :F]


def graph_convolution_ref(x, adj, h0, weight, *, lamda, alpha, l,
                          residual=False):
    theta = math.log(lamda / l + 1.0)
    hi = adj @ x
    support = (1.0 - alpha) * hi + alpha * h0
    out = theta * (support @ weight) + (1.0 - theta) * support
    if residual:
        out = out + x
    return out


def _make_inputs(key, N, F):
    k_adj, k_x, k_h0, k_w = jax.random.split(key, 4)
    adj = jax.random.uniform(k_adj, (N, N), dtype=jnp.float32)
    adj = adj / jnp.sum(adj, axis=1, keepdims=True)   # row-normalized adjacency
    x = jax.random.normal(k_x, (N, F), dtype=jnp.float32)
    h0 = jax.random.normal(k_h0, (N, F), dtype=jnp.float32)
    stdv = 1.0 / math.sqrt(F)                          # reset_parameters
    w = jax.random.uniform(k_w, (F, F), minval=-stdv, maxval=stdv,
                           dtype=jnp.float32)
    return adj, x, h0, w


if __name__ == "__main__":
    lamda, alpha = 0.5, 0.1
    key = jax.random.PRNGKey(0)
    key1, key2 = jax.random.split(key)

    # --- Test 1: uneven shapes (exercise M/K/F padding + K accumulation),
    #             f32 compute path, residual=True. ---
    N, F, layer_l = 200, 96, 2.0
    adj, x, h0, w = _make_inputs(key1, N, F)
    out = graph_convolution(
        x, adj, h0, w, lamda=lamda, alpha=alpha, l=layer_l,
        residual=True, tile_m=64, tile_k=128, compute_dtype=jnp.float32)
    out = jax.block_until_ready(out)
    ref = graph_convolution_ref(
        x, adj, h0, w, lamda=lamda, alpha=alpha, l=layer_l, residual=True)
    assert out.shape == (N, F)
    assert jnp.allclose(out, ref, atol=5e-3, rtol=5e-3), \
        float(jnp.max(jnp.abs(out - ref)))

    # --- Test 2: default bf16 matmul path (f32 accumulation + f32 epilogue). ---
    N, F, layer_l = 128, 64, 1.0
    adj, x, h0, w = _make_inputs(key2, N, F)
    out = graph_convolution(
        x, adj, h0, w, lamda=lamda, alpha=alpha, l=layer_l, residual=False)
    out = jax.block_until_ready(out)
    ref = graph_convolution_ref(
        x, adj, h0, w, lamda=lamda, alpha=alpha, l=layer_l, residual=False)
    assert out.shape == (N, F)
    assert jnp.allclose(out, ref, atol=2e-2, rtol=2e-2), \
        float(jnp.max(jnp.abs(out - ref)))

    print("KERNEL_OK")
</pallas_src>

<mosaic_0001>
module attributes {stable_mosaic.version = 11 : i64} {
  func.func @_gcn_kernel(%arg0: i32, %arg1: i32, %arg2: memref<64x128xf32, #tpu.memory_space<vmem>>, %arg3: memref<128x128xf32, #tpu.memory_space<vmem>>, %arg4: memref<64x128xf32, #tpu.memory_space<vmem>>, %arg5: memref<128x128xf32, #tpu.memory_space<vmem>>, %arg6: memref<64x128xf32, #tpu.memory_space<vmem>>, %arg7: memref<64x128xf32, #tpu.memory_space<vmem>>, %arg8: memref<64x128xf32, #tpu.memory_space<vmem>>) attributes {dimension_semantics = [#tpu.dimension_semantics<parallel>, #tpu.dimension_semantics<arbitrary>], iteration_bounds = array<i64: 4, 2>, scalar_prefetch = 0 : i64, scratch_operands = 1 : i64, tpu.core_type = #tpu.core_type<tc>, window_params = [{transform_indices = @transform_0, window_bounds = array<i64: 64, 128>}, {transform_indices = @transform_1, window_bounds = array<i64: 128, 128>}, {transform_indices = @transform_2, window_bounds = array<i64: 64, 128>}, {pipeline_mode = #tpu.pipeline_mode<synchronous>, transform_indices = @transform_3, window_bounds = array<i64: 128, 128>}, {transform_indices = @transform_4, window_bounds = array<i64: 64, 128>}, {transform_indices = @transform_5, window_bounds = array<i64: 64, 128>}]} {
    %c0_i32 = arith.constant 0 : i32
    %0 = arith.cmpi eq, %arg1, %c0_i32 : i32
    %1 = arith.extui %0 : i1 to i32
    %c0_i32_0 = arith.constant 0 : i32
    %2 = arith.cmpi ne, %1, %c0_i32_0 : i32
    scf.if %2 {
      %cst_9 = arith.constant 0.000000e+00 : f32
      %12 = vector.broadcast %cst_9 : f32 to vector<64x128xf32>
      %c0_10 = arith.constant 0 : index
      %c0_11 = arith.constant 0 : index
      %13 = vector.load %arg8[%c0_10, %c0_11] : memref<64x128xf32, #tpu.memory_space<vmem>>, vector<64x128xf32>
      tpu.vector_store %arg8[%c0_10, %c0_11], %12 {strides = array<i32>} : memref<64x128xf32, #tpu.memory_space<vmem>>, vector<64x128xf32>,
    } else {
    }
    %c0 = arith.constant 0 : index
    %c0_1 = arith.constant 0 : index
    %3 = vector.load %arg8[%c0, %c0_1] : memref<64x128xf32, #tpu.memory_space<vmem>>, vector<64x128xf32>
    %c0_2 = arith.constant 0 : index
    %c0_3 = arith.constant 0 : index
    %4 = vector.load %arg2[%c0_2, %c0_3] : memref<64x128xf32, #tpu.memory_space<vmem>>, vector<64x128xf32>
    %c0_4 = arith.constant 0 : index
    %c0_5 = arith.constant 0 : index
    %5 = vector.load %arg3[%c0_4, %c0_5] : memref<128x128xf32, #tpu.memory_space<vmem>>, vector<128x128xf32>
    %cst = arith.constant dense<0.000000e+00> : vector<64x128xf32>
    %6 = tpu.matmul %4, %5, %cst {dimension_numbers = #tpu.dot_dimension_numbers<[1], [0], [0], [1], [0, 0, 1, 1], [], []>} : vector<64x128xf32>, vector<128x128xf32>, vector<64x128xf32> -> vector<64x128xf32>
    %7 = arith.addf %3, %6 : vector<64x128xf32>
    %c0_6 = arith.constant 0 : index
    %c0_7 = arith.constant 0 : index
    %8 = vector.load %arg8[%c0_6, %c0_7] : memref<64x128xf32, #tpu.memory_space<vmem>>, vector<64x128xf32>
    tpu.vector_store %arg8[%c0_6, %c0_7], %7 {strides = array<i32>} : memref<64x128xf32, #tpu.memory_space<vmem>>, vector<64x128xf32>,
    %c1_i32 = arith.constant 1 : i32
    %9 = arith.cmpi eq, %arg1, %c1_i32 : i32
    %10 = arith.extui %9 : i1 to i32
    %c0_i32_8 = arith.constant 0 : i32
    %11 = arith.cmpi ne, %10, %c0_i32_8 : i32
    scf.if %11 {
      %c0_9 = arith.constant 0 : index
      %c0_10 = arith.constant 0 : index
      %12 = vector.load %arg8[%c0_9, %c0_10] : memref<64x128xf32, #tpu.memory_space<vmem>>, vector<64x128xf32>
      %cst_11 = arith.constant 0.899999976 : f32
      %13 = vector.broadcast %cst_11 : f32 to vector<64x128xf32>
      %14 = arith.mulf %13, %12 : vector<64x128xf32>
      %c0_12 = arith.constant 0 : index
      %c0_13 = arith.constant 0 : index
      %15 = vector.load %arg4[%c0_12, %c0_13] : memref<64x128xf32, #tpu.memory_space<vmem>>, vector<64x128xf32>
      %cst_14 = arith.constant 1.000000e-01 : f32
      %16 = vector.broadcast %cst_14 : f32 to vector<64x128xf32>
      %17 = arith.mulf %16, %15 : vector<64x128xf32>
      %18 = arith.addf %14, %17 : vector<64x128xf32>
      %c0_15 = arith.constant 0 : index
      %c0_16 = arith.constant 0 : index
      %19 = vector.load %arg5[%c0_15, %c0_16] : memref<128x128xf32, #tpu.memory_space<vmem>>, vector<128x128xf32>
      %cst_17 = arith.constant dense<0.000000e+00> : vector<64x128xf32>
      %20 = tpu.matmul %18, %19, %cst_17 {dimension_numbers = #tpu.dot_dimension_numbers<[1], [0], [0], [1], [0, 0, 1, 1], [], []>} : vector<64x128xf32>, vector<128x128xf32>, vector<64x128xf32> -> vector<64x128xf32>
      %cst_18 = arith.constant 0.223143548 : f32
      %21 = vector.broadcast %cst_18 : f32 to vector<64x128xf32>
      %22 = arith.mulf %21, %20 : vector<64x128xf32>
      %cst_19 = arith.constant 0.776856422 : f32
      %23 = vector.broadcast %cst_19 : f32 to vector<64x128xf32>
      %24 = arith.mulf %23, %18 : vector<64x128xf32>
      %25 = arith.addf %22, %24 : vector<64x128xf32>
      %c0_20 = arith.constant 0 : index
      %c0_21 = arith.constant 0 : index
      %26 = vector.load %arg6[%c0_20, %c0_21] : memref<64x128xf32, #tpu.memory_space<vmem>>, vector<64x128xf32>
      %27 = arith.addf %25, %26 : vector<64x128xf32>
      %c0_22 = arith.constant 0 : index
      %c0_23 = arith.constant 0 : index
      %28 = vector.load %arg7[%c0_22, %c0_23] : memref<64x128xf32, #tpu.memory_space<vmem>>, vector<64x128xf32>
      tpu.vector_store %arg7[%c0_22, %c0_23], %27 {strides = array<i32>} : memref<64x128xf32, #tpu.memory_space<vmem>>, vector<64x128xf32>,
    } else {
    }
    return
  }
  func.func @transform_0(%arg0: i32, %arg1: i32) -> (i32, i32) {
    %c0_i32 = arith.constant 0 : i32
    return %arg0, %arg1 : i32, i32
  }
  func.func @transform_1(%arg0: i32, %arg1: i32) -> (i32, i32) {
    %c0_i32 = arith.constant 0 : i32
    %c0_i32_0 = arith.constant 0 : i32
    return %arg1, %c0_i32 : i32, i32
  }
  func.func @transform_2(%arg0: i32, %arg1: i32) -> (i32, i32) {
    %c0_i32 = arith.constant 0 : i32
    %c0_i32_0 = arith.constant 0 : i32
    return %arg0, %c0_i32 : i32, i32
  }
  func.func @transform_3(%arg0: i32, %arg1: i32) -> (i32, i32) {
    %c0_i32 = arith.constant 0 : i32
    %c0_i32_0 = arith.constant 0 : i32
    %c0_i32_1 = arith.constant 0 : i32
    return %c0_i32, %c0_i32_0 : i32, i32
  }
  func.func @transform_4(%arg0: i32, %arg1: i32) -> (i32, i32) {
    %c0_i32 = arith.constant 0 : i32
    %c0_i32_0 = arith.constant 0 : i32
    return %arg0, %c0_i32 : i32, i32
  }
  func.func @transform_5(%arg0: i32, %arg1: i32) -> (i32, i32) {
    %c0_i32 = arith.constant 0 : i32
    %c0_i32_0 = arith.constant 0 : i32
    return %arg0, %c0_i32 : i32, i32
  }
}

</mosaic_0001>

<llo_original>
// kernel: tpu_custom_call.1
$region0: #{tpu_custom_call.1}
  #allocation0 [shape = 'u32[]', space=smem, size = 0x4, offset = 0x4, fixed_abs, tag = 'smem constant byte address 0x4 - core index']
  #allocation1 [shape = 'u32[144,128]{1,0:T(1,128)}', space=vmem, size = 0x12000, scoped, tag = 'internal scratch']
  #allocation2 [shape = 'f32[64,128]{1,0:T(8,128)}', space=vmem, size = 0x8000, scoped, tag = 'scratch operand']
  %s0 = inlined_call_operand.hbm [shape: f32[256,256], index: 0, kind: input, shape index: {}]
  %s1 = inlined_call_operand.hbm [shape: f32[256,128], index: 1, kind: input, shape index: {}]
  %s2 = inlined_call_operand.hbm [shape: f32[256,128], index: 2, kind: input, shape index: {}]
  %s3 = inlined_call_operand.hbm [shape: f32[128,128], index: 3, kind: input, shape index: {}]
  %s4 = inlined_call_operand.hbm [shape: f32[256,128], index: 4, kind: input, shape index: {}]
  %s5 = inlined_call_operand.hbm [shape: f32[256,128], index: 5, kind: output, shape index: {}]
  %s6 = sld [smem:[#allocation0]]
  $region81: #{tpu_custom_call.1} parent=0
    _
  %s8 = ssub.s32 1, %s6
  %s9 = scalar_select 0, %s8, %s6
  $region1: #{tpu_custom_call.1} parent=0
    #allocation3 [shape = 'u8[65536]{0}', space=vmem, size = 0x10000, scoped, tag = 'input window, operand 0']
    #allocation4 [shape = 's32[2]{0}', space=sflag, size = 0x8, scoped, tag = 'scoped memory for tpu_custom_call.1']
    #allocation5 [shape = 's32[2]{0}', space=sflag, size = 0x8, scoped, tag = 'scoped memory for tpu_custom_call.1']
    #allocation6 [shape = 'u8[131072]{0}', space=vmem, size = 0x20000, scoped, tag = 'input window, operand 1']
    #allocation7 [shape = 's32[2]{0}', space=sflag, size = 0x8, scoped, tag = 'scoped memory for tpu_custom_call.1']
    #allocation8 [shape = 'u8[65536]{0}', space=vmem, size = 0x10000, scoped, tag = 'input window, operand 2']
    #allocation9 [shape = 'u8[65536]{0}', space=vmem, size = 0x10000, scoped, tag = 'input window, operand 3, single buffered']
    #allocation10 [shape = 's32[1]{0}', space=sflag, size = 0x4, scoped, tag = 'scoped memory for tpu_custom_call.1']
    #allocation11 [shape = 'u8[65536]{0}', space=vmem, size = 0x10000, scoped, tag = 'input window, operand 4']
    #allocation12 [shape = 'u8[65536]{0}', space=vmem, size = 0x10000, scoped, tag = 'output window, operand 0']
    %10 = vsyncpa [#allocation4], 0
    %s11 = scalar_lea.sflag [#allocation4], 1
    %12 = vsyncpa %s11, 0
    %13 = vsyncpa [#allocation7], 0
    %s14 = scalar_lea.sflag [#allocation7], 1
    %15 = vsyncpa %s14, 0
    %16 = vsyncpa [#allocation10], 0
    %17 = vsyncpa [#allocation5], 0
    %s18 = scalar_lea.sflag [#allocation5], 1
    %19 = vsyncpa %s18, 0
    loop: start=0, step=1, limit=10
    $region2: #{tpu_custom_call.1} parent=1 // loop_pre_header
      _
    $region3: #{tpu_custom_call.1} parent=1 // loop_header
      %s21 = sphi 0, %s25
      %p22 = scmp.ge.s32.totalorder %s21, 10
      %s28 = sphi 0, %s40
      %s29 = sphi 0, %s36
      %s30 = sphi 0, %s28
      %s31 = sphi 0, %s29
      %s32 = sphi 0, %s30
      %s33 = sphi 0, %s31
      %s45 = sphi 0, %s47
      %s48 = sphi 0, %s45
      %s49 = sphi 0, %s48
      %s65 = sphi 0, %s49
      %s71 = sphi 0, %s73
      %s74 = sphi 0, %s71
      %s75 = sphi 0, %s74
      %s91 = sphi 0, %s75
      %s97 = sphi 0, %s99
      %s100 = sphi 0, %s97
      %s101 = sphi 0, %s100
      %s117 = sphi 0, %s101
      %s121 = sphi 0, %s121
      %s123 = sphi 0, %s121
      %s124 = sphi 0, %s123
      %s138 = sphi 0, %s124
      %s144 = sphi 0, %s146
      %s147 = sphi 0, %s144
      %s148 = sphi 0, %s147
      %s164 = sphi 0, %s148
      %s170 = sphi 0, %s172
      %s173 = sphi 0, %s170
      %s174 = sphi 0, %s173
      %s190 = sphi 0, %s174
    $region4: #{tpu_custom_call.1} parent=1 // loop_header_branch
      %24 = sbr.rel (%p22) target = $region8
    $region5: #{tpu_custom_call.1} parent=1 // loop_body
      %s26 = ssub.s32 %s21, 1
      %s27 = ssub.s32 %s21, 2
      %s34 = sadd.s32 1, %s29
      %p35 = scmp.ge.s32.totalorder %s34, 2
      %s36 = scalar_select %p35, 0, %s34
      %s37 = sadd.s32 1, %s28
      %s38 = scalar_select %p35, %s37, %s28
      %p39 = scmp.ge.s32.totalorder %s38, 4
      %s40 = scalar_select %p39, 0, %s38
      %s41 = ssub.s32 %s28, %s40
      %s42 = ssub.s32 %s29, %s36
      %s43 = sor.u32 %s41, %s42
      %p44 = scmp.eq.s32.totalorder %s43, 0
      %s46 = sadd.s32 %s45, 1
      %s47 = scalar_select %p44, %s45, %s46
      %p50 = pneg %p44
      %p51 = scmp.eq.s32.totalorder %s21, 7
      %p52 = por %p50, %p51
      %p53 = scmp.ne.s32.totalorder %s45, %s48
      %p54 = scmp.eq.s32.totalorder %s21, 0
      %p55 = por %p53, %p54
      %p56 = scmp.ne.s32.totalorder %s45, %s48
      %p57 = scmp.eq.s32.totalorder %s26, 7
      %p58 = por %p56, %p57
      %p59 = scmp.ne.s32.totalorder %s48, %s49
      %p60 = scmp.eq.s32.totalorder %s26, 0
      %p61 = por %p59, %p60
      %p62 = scmp.ne.s32.totalorder %s48, %s49
      %p63 = scmp.eq.s32.totalorder %s27, 7
      %p64 = por %p62, %p63
      %p66 = scmp.ne.s32.totalorder %s49, %s65
      %p67 = scmp.eq.s32.totalorder %s27, 0
      %p68 = por %p66, %p67
      %s69 = ssub.s32 %s29, %s36
      %p70 = scmp.eq.s32.totalorder %s69, 0
      %s72 = sadd.s32 %s71, 1
      %s73 = scalar_select %p70, %s71, %s72
      %p76 = pneg %p70
      %p77 = scmp.eq.s32.totalorder %s21, 7
      %p78 = por %p76, %p77
      %p79 = scmp.ne.s32.totalorder %s71, %s74
      %p80 = scmp.eq.s32.totalorder %s21, 0
      %p81 = por %p79, %p80
      %p82 = scmp.ne.s32.totalorder %s71, %s74
      %p83 = scmp.eq.s32.totalorder %s26, 7
      %p84 = por %p82, %p83
      %p85 = scmp.ne.s32.totalorder %s74, %s75
      %p86 = scmp.eq.s32.totalorder %s26, 0
      %p87 = por %p85, %p86
      %p88 = scmp.ne.s32.totalorder %s74, %s75
      %p89 = scmp.eq.s32.totalorder %s27, 7
      %p90 = por %p88, %p89
      %p92 = scmp.ne.s32.totalorder %s75, %s91
      %p93 = scmp.eq.s32.totalorder %s27, 0
      %p94 = por %p92, %p93
      %s95 = ssub.s32 %s28, %s40
      %p96 = scmp.eq.s32.totalorder %s95, 0
      %s98 = sadd.s32 %s97, 1
      %s99 = scalar_select %p96, %s97, %s98
      %p102 = pneg %p96
      %p103 = scmp.eq.s32.totalorder %s21, 7
      %p104 = por %p102, %p103
      %p105 = scmp.ne.s32.totalorder %s97, %s100
      %p106 = scmp.eq.s32.totalorder %s21, 0
      %p107 = por %p105, %p106
      %p108 = scmp.ne.s32.totalorder %s97, %s100
      %p109 = scmp.eq.s32.totalorder %s26, 7
      %p110 = por %p108, %p109
      %p111 = scmp.ne.s32.totalorder %s100, %s101
      %p112 = scmp.eq.s32.totalorder %s26, 0
      %p113 = por %p111, %p112
      %p114 = scmp.ne.s32.totalorder %s100, %s101
      %p115 = scmp.eq.s32.totalorder %s27, 7
      %p116 = por %p114, %p115
      %p118 = scmp.ne.s32.totalorder %s101, %s117
      %p119 = scmp.eq.s32.totalorder %s27, 0
      %p120 = por %p118, %p119
      %s122 = sadd.s32 %s121, 1
      %p125 = scmp.eq.s32.totalorder %s21, 7
      %p126 = scmp.ne.s32.totalorder %s121, %s123
      %p127 = scmp.eq.s32.totalorder %s21, 0
      %p128 = por %p126, %p127
      %p129 = scmp.ne.s32.totalorder %s121, %s123
      %p130 = scmp.eq.s32.totalorder %s26, 7
      %p131 = por %p129, %p130
      %p132 = scmp.ne.s32.totalorder %s123, %s124
      %p133 = scmp.eq.s32.totalorder %s26, 0
      %p134 = por %p132, %p133
      %p135 = scmp.ne.s32.totalorder %s123, %s124
      %p136 = scmp.eq.s32.totalorder %s27, 7
      %p137 = por %p135, %p136
      %p139 = scmp.ne.s32.totalorder %s124, %s138
      %p140 = scmp.eq.s32.totalorder %s27, 0
      %p141 = por %p139, %p140
      %s142 = ssub.s32 %s28, %s40
      %p143 = scmp.eq.s32.totalorder %s142, 0
      %s145 = sadd.s32 %s144, 1
      %s146 = scalar_select %p143, %s144, %s145
      %p149 = pneg %p143
      %p150 = scmp.eq.s32.totalorder %s21, 7
      %p151 = por %p149, %p150
      %p152 = scmp.ne.s32.totalorder %s144, %s147
      %p153 = scmp.eq.s32.totalorder %s21, 0
      %p154 = por %p152, %p153
      %p155 = scmp.ne.s32.totalorder %s144, %s147
      %p156 = scmp.eq.s32.totalorder %s26, 7
      %p157 = por %p155, %p156
      %p158 = scmp.ne.s32.totalorder %s147, %s148
      %p159 = scmp.eq.s32.totalorder %s26, 0
      %p160 = por %p158, %p159
      %p161 = scmp.ne.s32.totalorder %s147, %s148
      %p162 = scmp.eq.s32.totalorder %s27, 7
      %p163 = por %p161, %p162
      %p165 = scmp.ne.s32.totalorder %s148, %s164
      %p166 = scmp.eq.s32.totalorder %s27, 0
      %p167 = por %p165, %p166
      %s168 = ssub.s32 %s28, %s40
      %p169 = scmp.eq.s32.totalorder %s168, 0
      %s171 = sadd.s32 %s170, 1
      %s172 = scalar_select %p169, %s170, %s171
      %p175 = pneg %p169
      %p176 = scmp.eq.s32.totalorder %s21, 7
      %p177 = por %p175, %p176
      %p178 = scmp.ne.s32.totalorder %s170, %s173
      %p179 = scmp.eq.s32.totalorder %s21, 0
      %p180 = por %p178, %p179
      %p181 = scmp.ne.s32.totalorder %s170, %s173
      %p182 = scmp.eq.s32.totalorder %s26, 7
      %p183 = por %p181, %p182
      %p184 = scmp.ne.s32.totalorder %s173, %s174
      %p185 = scmp.eq.s32.totalorder %s26, 0
      %p186 = por %p184, %p185
      %p187 = scmp.ne.s32.totalorder %s173, %s174
      %p188 = scmp.eq.s32.totalorder %s27, 7
      %p189 = por %p187, %p188
      %p191 = scmp.ne.s32.totalorder %s174, %s190
      %p192 = scmp.eq.s32.totalorder %s27, 0
      %p193 = por %p191, %p192
      %p194 = scmp.le.s32.totalorder 1, %s21
      %p195 = scmp.lt.s32.totalorder %s21, 9
      %p196 = pnand %p194, %p195
      %p197 = pneg %p196
      // Predicated region
      $region9: #{tpu_custom_call.1} parent=5 // pred_check
        _
      $region10: #{tpu_custom_call.1} parent=5 // pred_check_branch
        %199 = sbr.rel (%p196) target = $region12
      $region11: #{tpu_custom_call.1} parent=5 // pred_region
        %s200 = ssub.s32 %s21, 1
        // Predicated region
        $region13: #{tpu_custom_call.1} parent=11 // pred_check
          %p201 = pneg %p134
        $region14: #{tpu_custom_call.1} parent=11 // pred_check_branch
          %203 = sbr.rel (%p201) target = $region16
        $region15: #{tpu_custom_call.1} parent=11 // pred_region
          %s205 = ssub.s32 2048, 2048
          %206 = vsyncadd [#allocation10], %s205
          %s207 = sshll.u32 [#allocation9], 4
          %s208 = int_to_ptr.vmem [resolvable:$true] %s207
          %213 = dma.hbm_to_vmem [thread:$0]  %s3, 2048, %s208, [#allocation10], 128, 128, 8
        $region16: #{tpu_custom_call.1} parent=11 // pred_fallthru
          _
      $region12: #{tpu_custom_call.1} parent=5 // pred_fallthru
        _
      %p214 = scmp.lt.s32.totalorder %s21, 8
      // Predicated region
      $region17: #{tpu_custom_call.1} parent=5 // pred_check
        %p215 = pneg %p214
      $region18: #{tpu_custom_call.1} parent=5 // pred_check_branch
        %217 = sbr.rel (%p215) target = $region20
      $region19: #{tpu_custom_call.1} parent=5 // pred_region
        // Predicated region
        $region21: #{tpu_custom_call.1} parent=19 // pred_check
          %p218 = pneg %p55
        $region22: #{tpu_custom_call.1} parent=19 // pred_check_branch
          %220 = sbr.rel (%p218) target = $region24
        $region23: #{tpu_custom_call.1} parent=19 // pred_region
          %s221 = sand.u32 %s21, 1
          %s222 = scalar_lea.sflag [#allocation4], %s221
          %s223 = sand.u32 %s45, 1
          %s224 = smul.addr %s223, 64
          %s225 = scalar_lea.vmem [#allocation3], %s224
          %s226 = smul.u32 8, %s28
          %s228 = ssub.s32 1024, 1024
          %229 = vsyncadd %s222, %s228
          %s230 = smul.addr %s226, 2
          %s231 = sadd.s32 %s29, %s230
          %s232 = smul.addr %s231, 128
          %s233 = scalar_lea.hbm %s0, %s232
          %s234 = sshll.u32 %s225, 4
          %s235 = int_to_ptr.vmem [resolvable:$true] %s234
          %240 = dma.hbm_to_vmem [thread:$0]  %s233, 1024, %s235, %s222, 256, 128, 8
        $region24: #{tpu_custom_call.1} parent=19 // pred_fallthru
          _
        // Predicated region
        $region25: #{tpu_custom_call.1} parent=19 // pred_check
          %p241 = pneg %p81
        $region26: #{tpu_custom_call.1} parent=19 // pred_check_branch
          %243 = sbr.rel (%p241) target = $region28
        $region27: #{tpu_custom_call.1} parent=19 // pred_region
          %s244 = sand.u32 %s21, 1
          %s245 = scalar_lea.sflag [#allocation7], %s244
          %s246 = sand.u32 %s71, 1
          %s247 = smul.addr %s246, 128
          %s248 = scalar_lea.vmem [#allocation6], %s247
          %s249 = smul.u32 16, %s29
          %s251 = ssub.s32 2048, 2048
          %252 = vsyncadd %s245, %s251
          %s253 = smul.addr %s249, 128
          %s254 = scalar_lea.hbm %s1, %s253
          %s255 = sshll.u32 %s248, 4
          %s256 = int_to_ptr.vmem [resolvable:$true] %s255
          %261 = dma.hbm_to_vmem [thread:$0]  %s254, 2048, %s256, %s245, 128, 128, 8
        $region28: #{tpu_custom_call.1} parent=19 // pred_fallthru
          _
        // Predicated region
        $region29: #{tpu_custom_call.1} parent=19 // pred_check
          %p262 = pneg %p107
        $region30: #{tpu_custom_call.1} parent=19 // pred_check_branch
          %264 = sbr.rel (%p262) target = $region32
        $region31: #{tpu_custom_call.1} parent=19 // pred_region
          %s265 = sand.u32 %s21, 1
          %s266 = scalar_lea.sflag [#allocation7], %s265
          %s267 = sand.u32 %s97, 1
          %s268 = smul.addr %s267, 64
          %s269 = scalar_lea.vmem [#allocation8], %s268
          %s270 = smul.u32 8, %s28
          %s272 = ssub.s32 1024, 1024
          %273 = vsyncadd %s266, %s272
          %s274 = smul.addr %s270, 128
          %s275 = scalar_lea.hbm %s2, %s274
          %s276 = sshll.u32 %s269, 4
          %s277 = int_to_ptr.vmem [resolvable:$true] %s276
          %282 = dma.hbm_to_vmem [thread:$0]  %s275, 1024, %s277, %s266, 128, 128, 8
        $region32: #{tpu_custom_call.1} parent=19 // pred_fallthru
          _
        // Predicated region
        $region33: #{tpu_custom_call.1} parent=19 // pred_check
          %p283 = pneg %p154
        $region34: #{tpu_custom_call.1} parent=19 // pred_check_branch
          %285 = sbr.rel (%p283) target = $region36
        $region35: #{tpu_custom_call.1} parent=19 // pred_region
          %s286 = sand.u32 %s21, 1
          %s287 = scalar_lea.sflag [#allocation4], %s286
          %s288 = sand.u32 %s144, 1
          %s289 = smul.addr %s288, 64
          %s290 = scalar_lea.vmem [#allocation11], %s289
          %s291 = smul.u32 8, %s28
          %s293 = ssub.s32 1024, 1024
          %294 = vsyncadd %s287, %s293
          %s295 = smul.addr %s291, 128
          %s296 = scalar_lea.hbm %s4, %s295
          %s297 = sshll.u32 %s290, 4
          %s298 = int_to_ptr.vmem [resolvable:$true] %s297
          %303 = dma.hbm_to_vmem [thread:$0]  %s296, 1024, %s298, %s287, 128, 128, 8
        $region36: #{tpu_custom_call.1} parent=19 // pred_fallthru
          _
      $region20: #{tpu_custom_call.1} parent=5 // pred_fallthru
        _
      %p304 = scmp.le.s32.totalorder 1, %s21
      %p305 = scmp.lt.s32.totalorder %s21, 9
      %p306 = pnand %p304, %p305
      %p307 = pneg %p306
      // Predicated region
      $region37: #{tpu_custom_call.1} parent=5 // pred_check
        _
      $region38: #{tpu_custom_call.1} parent=5 // pred_check_branch
        %309 = sbr.rel (%p306) target = $region40
      $region39: #{tpu_custom_call.1} parent=5 // pred_region
        %s310 = ssub.s32 %s21, 1
        %s311 = sand.u32 %s26, 1
        %s312 = scalar_lea.sflag [#allocation4], %s311
        %s313 = sand.u32 %s48, 1
        %s314 = smul.addr %s313, 64
        %s315 = scalar_lea.vmem [#allocation3], %s314
        // Predicated region
        $region41: #{tpu_custom_call.1} parent=39 // pred_check
          %p316 = pneg %p61
        $region42: #{tpu_custom_call.1} parent=39 // pred_check_branch
          %318 = sbr.rel (%p316) target = $region44
        $region43: #{tpu_custom_call.1} parent=39 // pred_region
          %319 = dma.done %s312, 1024
        $region44: #{tpu_custom_call.1} parent=39 // pred_fallthru
          _
        %s320 = sand.u32 %s26, 1
        %s321 = scalar_lea.sflag [#allocation7], %s320
        %s322 = sand.u32 %s74, 1
        %s323 = smul.addr %s322, 128
        %s324 = scalar_lea.vmem [#allocation6], %s323
        // Predicated region
        $region45: #{tpu_custom_call.1} parent=39 // pred_check
          %p325 = pneg %p87
        $region46: #{tpu_custom_call.1} parent=39 // pred_check_branch
          %327 = sbr.rel (%p325) target = $region48
        $region47: #{tpu_custom_call.1} parent=39 // pred_region
          %328 = dma.done %s321, 2048
        $region48: #{tpu_custom_call.1} parent=39 // pred_fallthru
          _
        %s329 = sand.u32 %s26, 1
        %s330 = scalar_lea.sflag [#allocation7], %s329
        %s331 = sand.u32 %s100, 1
        %s332 = smul.addr %s331, 64
        %s333 = scalar_lea.vmem [#allocation8], %s332
        // Predicated region
        $region49: #{tpu_custom_call.1} parent=39 // pred_check
          %p334 = pneg %p113
        $region50: #{tpu_custom_call.1} parent=39 // pred_check_branch
          %336 = sbr.rel (%p334) target = $region52
        $region51: #{tpu_custom_call.1} parent=39 // pred_region
          %337 = dma.done %s330, 1024
        $region52: #{tpu_custom_call.1} parent=39 // pred_fallthru
          _
        // Predicated region
        $region53: #{tpu_custom_call.1} parent=39 // pred_check
          %p338 = pneg %p134
        $region54: #{tpu_custom_call.1} parent=39 // pred_check_branch
          %340 = sbr.rel (%p338) target = $region56
        $region55: #{tpu_custom_call.1} parent=39 // pred_region
          %341 = dma.done [#allocation10], 2048
        $region56: #{tpu_custom_call.1} parent=39 // pred_fallthru
          _
        %s342 = sand.u32 %s26, 1
        %s343 = scalar_lea.sflag [#allocation4], %s342
        %s344 = sand.u32 %s147, 1
        %s345 = smul.addr %s344, 64
        %s346 = scalar_lea.vmem [#allocation11], %s345
        // Predicated region
        $region57: #{tpu_custom_call.1} parent=39 // pred_check
          %p347 = pneg %p160
        $region58: #{tpu_custom_call.1} parent=39 // pred_check_branch
          %349 = sbr.rel (%p347) target = $region60
        $region59: #{tpu_custom_call.1} parent=39 // pred_region
          %350 = dma.done %s343, 1024
        $region60: #{tpu_custom_call.1} parent=39 // pred_fallthru
          _
        %s351 = sand.u32 %s26, 1
        %s352 = scalar_lea.sflag [#allocation4], %s351
        %s353 = sand.u32 %s48, 1
        %s354 = smul.addr %s353, 64
        %s355 = scalar_lea.vmem [#allocation3], %s354
        %p356 = pneg %p61
        %p357 = pneg %p58
        %s358 = sand.u32 %s26, 1
        %s359 = scalar_lea.sflag [#allocation7], %s358
        %s360 = sand.u32 %s74, 1
        %s361 = smul.addr %s360, 128
        %s362 = scalar_lea.vmem [#allocation6], %s361
        %p363 = pneg %p87
        %p364 = pneg %p84
        %s365 = sand.u32 %s26, 1
        %s366 = scalar_lea.sflag [#allocation7], %s365
        %s367 = sand.u32 %s100, 1
        %s368 = smul.addr %s367, 64
        %s369 = scalar_lea.vmem [#allocation8], %s368
        %p370 = pneg %p113
        %p371 = pneg %p110
        %p372 = pneg %p134
        %p373 = pneg %p131
        %s374 = sand.u32 %s26, 1
        %s375 = scalar_lea.sflag [#allocation4], %s374
        %s376 = sand.u32 %s147, 1
        %s377 = smul.addr %s376, 64
        %s378 = scalar_lea.vmem [#allocation11], %s377
        %p379 = pneg %p160
        %p380 = pneg %p157
        %p381 = pneg %p186
        %p382 = pneg %p183
        %s383 = sand.u32 %s173, 1
        %s384 = scalar_lea.sflag [#allocation5], %s383
        %s385 = sand.u32 %s173, 1
        %s386 = smul.addr %s385, 64
        %s387 = scalar_lea.vmem [#allocation12], %s386
        %s388 = smul.u32 8, %s30
        %s389 = smul.u32 16, %s31
        %s390 = smul.u32 8, %s30
        %s391 = smul.u32 8, %s30
        %s392 = smul.u32 8, %s30
        %p393 = scmp.eq.s32.totalorder %s31, 0
        // Predicated region
        $region61: #{tpu_custom_call.1} parent=39 // pred_check
          %p394 = pneg %p393
        $region62: #{tpu_custom_call.1} parent=39 // pred_check_branch
          %396 = sbr.rel (%p394) target = $region64
        $region63: #{tpu_custom_call.1} parent=39 // pred_region
          %397 = vst [vmem:[#allocation2] sm:$0xff] 0.0
          %398 = vst [vmem:[#allocation2 + $0x8] sm:$0xff] 0.0
          %399 = vst [vmem:[#allocation2 + $0x10] sm:$0xff] 0.0
          %400 = vst [vmem:[#allocation2 + $0x18] sm:$0xff] 0.0
          %401 = vst [vmem:[#allocation2 + $0x20] sm:$0xff] 0.0
          %402 = vst [vmem:[#allocation2 + $0x28] sm:$0xff] 0.0
          %403 = vst [vmem:[#allocation2 + $0x30] sm:$0xff] 0.0
          %404 = vst [vmem:[#allocation2 + $0x38] sm:$0xff] 0.0
        $region64: #{tpu_custom_call.1} parent=39 // pred_fallthru
          _
        %v405 = vld [vmem:[#allocation2] sm:$0xff]
        %v406 = vld [vmem:[#allocation2 + $0x8] sm:$0xff]
        %v407 = vld [vmem:[#allocation2 + $0x10] sm:$0xff]
        %v408 = vld [vmem:[#allocation2 + $0x18] sm:$0xff]
        %v409 = vld [vmem:[#allocation2 + $0x20] sm:$0xff]
        %v410 = vld [vmem:[#allocation2 + $0x28] sm:$0xff]
        %v411 = vld [vmem:[#allocation2 + $0x30] sm:$0xff]
        %v412 = vld [vmem:[#allocation2 + $0x38] sm:$0xff]
        %v413 = vld [vmem:[%s315] sm:$0xff]
        %v414 = vld [vmem:[%s315 + $0x8] sm:$0xff]
        %v415 = vld [vmem:[%s315 + $0x10] sm:$0xff]
        %v416 = vld [vmem:[%s315 + $0x18] sm:$0xff]
        %v417 = vld [vmem:[%s315 + $0x20] sm:$0xff]
        %v418 = vld [vmem:[%s315 + $0x28] sm:$0xff]
        %v419 = vld [vmem:[%s315 + $0x30] sm:$0xff]
        %v420 = vld [vmem:[%s315 + $0x38] sm:$0xff]
        %v421 = vld [vmem:[%s324] sm:$0xff]
        %v422 = vld [vmem:[%s324 + $0x8] sm:$0xff]
        %v423 = vld [vmem:[%s324 + $0x10] sm:$0xff]
        %v424 = vld [vmem:[%s324 + $0x18] sm:$0xff]
        %v425 = vld [vmem:[%s324 + $0x20] sm:$0xff]
        %v426 = vld [vmem:[%s324 + $0x28] sm:$0xff]
        %v427 = vld [vmem:[%s324 + $0x30] sm:$0xff]
        %v428 = vld [vmem:[%s324 + $0x38] sm:$0xff]
        %v429 = vld [vmem:[%s324 + $0x40] sm:$0xff]
        %v430 = vld [vmem:[%s324 + $0x48] sm:$0xff]
        %v431 = vld [vmem:[%s324 + $0x50] sm:$0xff]
        %v432 = vld [vmem:[%s324 + $0x58] sm:$0xff]
        %v433 = vld [vmem:[%s324 + $0x60] sm:$0xff]
        %v434 = vld [vmem:[%s324 + $0x68] sm:$0xff]
        %v435 = vld [vmem:[%s324 + $0x70] sm:$0xff]
        %v436 = vld [vmem:[%s324 + $0x78] sm:$0xff]
        %437 = vmatprep.subr.mxu0 0.0
        %438 = vmatpush1.msra.mxu0 %v421
        %439 = vmatprep.subr.mxu0 0.0
        %440 = vmatpush1.msra.mxu0 %v422
        %441 = vmatprep.subr.mxu0 0.0
        %442 = vmatpush1.msra.mxu0 %v423
        %443 = vmatprep.subr.mxu0 0.0
        %444 = vmatpush1.msra.mxu0 %v424
        %445 = vmatprep.subr.mxu0 0.0
        %446 = vmatpush1.msra.mxu0 %v425
        %447 = vmatprep.subr.mxu0 0.0
        %448 = vmatpush1.msra.mxu0 %v426
        %449 = vmatprep.subr.mxu0 0.0
        %450 = vmatpush1.msra.mxu0 %v427
        %451 = vmatprep.subr.mxu0 0.0
        %452 = vmatpush1.msra.mxu0 %v428
        %453 = vmatprep.subr.mxu0 0.0
        %454 = vmatpush1.msra.mxu0 %v429
        %455 = vmatprep.subr.mxu0 0.0
        %456 = vmatpush1.msra.mxu0 %v430
        %457 = vmatprep.subr.mxu0 0.0
        %458 = vmatpush1.msra.mxu0 %v431
        %459 = vmatprep.subr.mxu0 0.0
        %460 = vmatpush1.msra.mxu0 %v432
        %461 = vmatprep.subr.mxu0 0.0
        %462 = vmatpush1.msra.mxu0 %v433
        %463 = vmatprep.subr.mxu0 0.0
        %464 = vmatpush1.msra.mxu0 %v434
        %465 = vmatprep.subr.mxu0 0.0
        %466 = vmatpush1.msra.mxu0 %v435
        %467 = vmatprep.subr.mxu0 0.0
        %468 = vmatpush1.msra.mxu0 %v436
        %469 = vmatprep.subr.mxu0 0.0
        %470 = vmatpush1.msra.mxu0 0.0
        %471 = vmatprep.subr.mxu0 0.0
        %472 = vmatpush1.msra.mxu0 0.0
        %473 = vmatprep.subr.mxu0 0.0
        %474 = vmatpush1.msra.mxu0 0.0
        %475 = vmatprep.subr.mxu0 0.0
        %476 = vmatpush1.msra.mxu0 0.0
        %477 = vmatprep.subr.mxu0 0.0
        %478 = vmatpush1.msra.mxu0 0.0
        %479 = vmatprep.subr.mxu0 0.0
        %480 = vmatpush1.msra.mxu0 0.0
        %481 = vmatprep.subr.mxu0 0.0
        %482 = vmatpush1.msra.mxu0 0.0
        %483 = vmatprep.subr.mxu0 0.0
        %484 = vmatpush1.msra.mxu0 0.0
        %485 = vmatprep.subr.mxu0 0.0
        %486 = vmatpush1.msra.mxu0 0.0
        %487 = vmatprep.subr.mxu0 0.0
        %488 = vmatpush1.msra.mxu0 0.0
        %489 = vmatprep.subr.mxu0 0.0
        %490 = vmatpush1.msra.mxu0 0.0
        %491 = vmatprep.subr.mxu0 0.0
        %492 = vmatpush1.msra.mxu0 0.0
        %493 = vmatprep.subr.mxu0 0.0
        %494 = vmatpush1.msra.mxu0 0.0
        %495 = vmatprep.subr.mxu0 0.0
        %496 = vmatpush1.msra.mxu0 0.0
        %497 = vmatprep.subr.mxu0 0.0
        %498 = vmatpush1.msra.mxu0 0.0
        %499 = vmatprep.subr.mxu0 0.0
        %500 = vmatpush1.msra.mxu0 0.0
        %501 = vmatprep.mubr.f32.mxu0 0.0
        %502 = vmatmul.mubr.f32.gmra.mrb[0].mxu0 %v413
        %v503 = vpop.f32.mrb[0].mxu0
        %v504 = vadd.f32 0.0, %v503
        %v505 = vpop.f32.mrb[0].mxu0
        %506 = vmatprep.mubr.f32.mxu0 0.0
        %507 = vmatmul.mubr.f32.gmra.mrb[0].mxu0 %v414
        %v508 = vpop.f32.mrb[0].mxu0
        %v509 = vadd.f32 0.0, %v508
        %v510 = vpop.f32.mrb[0].mxu0
        %511 = vmatprep.mubr.f32.mxu0 0.0
        %512 = vmatmul.mubr.f32.gmra.mrb[0].mxu0 %v415
        %v513 = vpop.f32.mrb[0].mxu0
        %v514 = vadd.f32 0.0, %v513
        %v515 = vpop.f32.mrb[0].mxu0
        %516 = vmatprep.mubr.f32.mxu0 0.0
        %517 = vmatmul.mubr.f32.gmra.mrb[0].mxu0 %v416
        %v518 = vpop.f32.mrb[0].mxu0
        %v519 = vadd.f32 0.0, %v518
        %v520 = vpop.f32.mrb[0].mxu0
        %521 = vmatprep.mubr.f32.mxu0 0.0
        %522 = vmatmul.mubr.f32.gmra.mrb[0].mxu0 %v417
        %v523 = vpop.f32.mrb[0].mxu0
        %v524 = vadd.f32 0.0, %v523
        %v525 = vpop.f32.mrb[0].mxu0
        %526 = vmatprep.mubr.f32.mxu0 0.0
        %527 = vmatmul.mubr.f32.gmra.mrb[0].mxu0 %v418
        %v528 = vpop.f32.mrb[0].mxu0
        %v529 = vadd.f32 0.0, %v528
        %v530 = vpop.f32.mrb[0].mxu0
        %531 = vmatprep.mubr.f32.mxu0 0.0
        %532 = vmatmul.mubr.f32.gmra.mrb[0].mxu0 %v419
        %v533 = vpop.f32.mrb[0].mxu0
        %v534 = vadd.f32 0.0, %v533
        %v535 = vpop.f32.mrb[0].mxu0
        %536 = vmatprep.mubr.f32.mxu0 0.0
        %537 = vmatmul.mubr.f32.gmra.mrb[0].mxu0 %v420
        %v538 = vpop.f32.mrb[0].mxu0
        %v539 = vadd.f32 0.0, %v538
        %v540 = vpop.f32.mrb[0].mxu0
        %541 = vdwg.mxu0
        %v542 = vadd.f32 %v405, %v504
        %v543 = vadd.f32 %v406, %v509
        %v544 = vadd.f32 %v407, %v514
        %v545 = vadd.f32 %v408, %v519
        %v546 = vadd.f32 %v409, %v524
        %v547 = vadd.f32 %v410, %v529
        %v548 = vadd.f32 %v411, %v534
        %v549 = vadd.f32 %v412, %v539
        %550 = vst [vmem:[#allocation2] sm:$0xff] %v542
        %551 = vst [vmem:[#allocation2 + $0x8] sm:$0xff] %v543
        %552 = vst [vmem:[#allocation2 + $0x10] sm:$0xff] %v544
        %553 = vst [vmem:[#allocation2 + $0x18] sm:$0xff] %v545
        %554 = vst [vmem:[#allocation2 + $0x20] sm:$0xff] %v546
        %555 = vst [vmem:[#allocation2 + $0x28] sm:$0xff] %v547
        %556 = vst [vmem:[#allocation2 + $0x30] sm:$0xff] %v548
        %557 = vst [vmem:[#allocation2 + $0x38] sm:$0xff] %v549
        %p558 = scmp.eq.s32.totalorder %s31, 1
        // Predicated region
        $region65: #{tpu_custom_call.1} parent=39 // pred_check
          %p559 = pneg %p558
        $region66: #{tpu_custom_call.1} parent=39 // pred_check_branch
          %561 = sbr.rel (%p559) target = $region68
        $region67: #{tpu_custom_call.1} parent=39 // pred_region
          %v562 = vld [vmem:[#allocation2] sm:$0xff]
          %v563 = vld [vmem:[#allocation2 + $0x8] sm:$0xff]
          %v564 = vld [vmem:[#allocation2 + $0x10] sm:$0xff]
          %v565 = vld [vmem:[#allocation2 + $0x18] sm:$0xff]
          %v566 = vld [vmem:[#allocation2 + $0x20] sm:$0xff]
          %v567 = vld [vmem:[#allocation2 + $0x28] sm:$0xff]
          %v568 = vld [vmem:[#allocation2 + $0x30] sm:$0xff]
          %v569 = vld [vmem:[#allocation2 + $0x38] sm:$0xff]
          %v570 = vmul.f32 %v562, 0.9
          %v571 = vmul.f32 %v563, 0.9
          %v572 = vmul.f32 %v564, 0.9
          %v573 = vmul.f32 %v565, 0.9
          %v574 = vmul.f32 %v566, 0.9
          %v575 = vmul.f32 %v567, 0.9
          %v576 = vmul.f32 %v568, 0.9
          %v577 = vmul.f32 %v569, 0.9
          %v578 = vld [vmem:[%s333] sm:$0xff]
          %v579 = vld [vmem:[%s333 + $0x8] sm:$0xff]
          %v580 = vld [vmem:[%s333 + $0x10] sm:$0xff]
          %v581 = vld [vmem:[%s333 + $0x18] sm:$0xff]
          %v582 = vld [vmem:[%s333 + $0x20] sm:$0xff]
          %v583 = vld [vmem:[%s333 + $0x28] sm:$0xff]
          %v584 = vld [vmem:[%s333 + $0x30] sm:$0xff]
          %v585 = vld [vmem:[%s333 + $0x38] sm:$0xff]
          %v586 = vmul.f32 %v578, 0.1
          %v587 = vmul.f32 %v579, 0.1
          %v588 = vmul.f32 %v580, 0.1
          %v589 = vmul.f32 %v581, 0.1
          %v590 = vmul.f32 %v582, 0.1
          %v591 = vmul.f32 %v583, 0.1
          %v592 = vmul.f32 %v584, 0.1
          %v593 = vmul.f32 %v585, 0.1
          %v594 = vadd.f32 %v570, %v586
          %v595 = vadd.f32 %v571, %v587
          %v596 = vadd.f32 %v572, %v588
          %v597 = vadd.f32 %v573, %v589
          %v598 = vadd.f32 %v574, %v590
          %v599 = vadd.f32 %v575, %v591
          %v600 = vadd.f32 %v576, %v592
          %v601 = vadd.f32 %v577, %v593
          %v602 = vld [vmem:[#allocation9] sm:$0xff]
          %v603 = vld [vmem:[#allocation9 + $0x8] sm:$0xff]
          %v604 = vld [vmem:[#allocation9 + $0x10] sm:$0xff]
          %v605 = vld [vmem:[#allocation9 + $0x18] sm:$0xff]
          %v606 = vld [vmem:[#allocation9 + $0x20] sm:$0xff]
          %v607 = vld [vmem:[#allocation9 + $0x28] sm:$0xff]
          %v608 = vld [vmem:[#allocation9 + $0x30] sm:$0xff]
          %v609 = vld [vmem:[#allocation9 + $0x38] sm:$0xff]
          %v610 = vld [vmem:[#allocation9 + $0x40] sm:$0xff]
          %v611 = vld [vmem:[#allocation9 + $0x48] sm:$0xff]
          %v612 = vld [vmem:[#allocation9 + $0x50] sm:$0xff]
          %v613 = vld [vmem:[#allocation9 + $0x58] sm:$0xff]
          %v614 = vld [vmem:[#allocation9 + $0x60] sm:$0xff]
          %v615 = vld [vmem:[#allocation9 + $0x68] sm:$0xff]
          %v616 = vld [vmem:[#allocation9 + $0x70] sm:$0xff]
          %v617 = vld [vmem:[#allocation9 + $0x78] sm:$0xff]
          %618 = vmatprep.subr.mxu0 0.0
          %619 = vmatpush1.msra.mxu0 %v602
          %620 = vmatprep.subr.mxu0 0.0
          %621 = vmatpush1.msra.mxu0 %v603
          %622 = vmatprep.subr.mxu0 0.0
          %623 = vmatpush1.msra.mxu0 %v604
          %624 = vmatprep.subr.mxu0 0.0
          %625 = vmatpush1.msra.mxu0 %v605
          %626 = vmatprep.subr.mxu0 0.0
          %627 = vmatpush1.msra.mxu0 %v606
          %628 = vmatprep.subr.mxu0 0.0
          %629 = vmatpush1.msra.mxu0 %v607
          %630 = vmatprep.subr.mxu0 0.0
          %631 = vmatpush1.msra.mxu0 %v608
          %632 = vmatprep.subr.mxu0 0.0
          %633 = vmatpush1.msra.mxu0 %v609
          %634 = vmatprep.subr.mxu0 0.0
          %635 = vmatpush1.msra.mxu0 %v610
          %636 = vmatprep.subr.mxu0 0.0
          %637 = vmatpush1.msra.mxu0 %v611
          %638 = vmatprep.subr.mxu0 0.0
          %639 = vmatpush1.msra.mxu0 %v612
          %640 = vmatprep.subr.mxu0 0.0
          %641 = vmatpush1.msra.mxu0 %v613
          %642 = vmatprep.subr.mxu0 0.0
          %643 = vmatpush1.msra.mxu0 %v614
          %644 = vmatprep.subr.mxu0 0.0
          %645 = vmatpush1.msra.mxu0 %v615
          %646 = vmatprep.subr.mxu0 0.0
          %647 = vmatpush1.msra.mxu0 %v616
          %648 = vmatprep.subr.mxu0 0.0
          %649 = vmatpush1.msra.mxu0 %v617
          %650 = vmatprep.subr.mxu0 0.0
          %651 = vmatpush1.msra.mxu0 0.0
          %652 = vmatprep.subr.mxu0 0.0
          %653 = vmatpush1.msra.mxu0 0.0
          %654 = vmatprep.subr.mxu0 0.0
          %655 = vmatpush1.msra.mxu0 0.0
          %656 = vmatprep.subr.mxu0 0.0
          %657 = vmatpush1.msra.mxu0 0.0
          %658 = vmatprep.subr.mxu0 0.0
          %659 = vmatpush1.msra.mxu0 0.0
          %660 = vmatprep.subr.mxu0 0.0
          %661 = vmatpush1.msra.mxu0 0.0
          %662 = vmatprep.subr.mxu0 0.0
          %663 = vmatpush1.msra.mxu0 0.0
          %664 = vmatprep.subr.mxu0 0.0
          %665 = vmatpush1.msra.mxu0 0.0
          %666 = vmatprep.subr.mxu0 0.0
          %667 = vmatpush1.msra.mxu0 0.0
          %668 = vmatprep.subr.mxu0 0.0
          %669 = vmatpush1.msra.mxu0 0.0
          %670 = vmatprep.subr.mxu0 0.0
          %671 = vmatpush1.msra.mxu0 0.0
          %672 = vmatprep.subr.mxu0 0.0
          %673 = vmatpush1.msra.mxu0 0.0
          %674 = vmatprep.subr.mxu0 0.0
          %675 = vmatpush1.msra.mxu0 0.0
          %676 = vmatprep.subr.mxu0 0.0
          %677 = vmatpush1.msra.mxu0 0.0
          %678 = vmatprep.subr.mxu0 0.0
          %679 = vmatpush1.msra.mxu0 0.0
          %680 = vmatprep.subr.mxu0 0.0
          %681 = vmatpush1.msra.mxu0 0.0
          %682 = vmatprep.mubr.f32.mxu0 0.0
          %683 = vmatmul.mubr.f32.gmra.mrb[0].mxu0 %v594
          %v684 = vpop.f32.mrb[0].mxu0
          %v685 = vadd.f32 0.0, %v684
          %v686 = vpop.f32.mrb[0].mxu0
          %687 = vmatprep.mubr.f32.mxu0 0.0
          %688 = vmatmul.mubr.f32.gmra.mrb[0].mxu0 %v595
          %v689 = vpop.f32.mrb[0].mxu0
          %v690 = vadd.f32 0.0, %v689
          %v691 = vpop.f32.mrb[0].mxu0
          %692 = vmatprep.mubr.f32.mxu0 0.0
          %693 = vmatmul.mubr.f32.gmra.mrb[0].mxu0 %v596
          %v694 = vpop.f32.mrb[0].mxu0
          %v695 = vadd.f32 0.0, %v694
          %v696 = vpop.f32.mrb[0].mxu0
          %697 = vmatprep.mubr.f32.mxu0 0.0
          %698 = vmatmul.mubr.f32.gmra.mrb[0].mxu0 %v597
          %v699 = vpop.f32.mrb[0].mxu0
          %v700 = vadd.f32 0.0, %v699
          %v701 = vpop.f32.mrb[0].mxu0
          %702 = vmatprep.mubr.f32.mxu0 0.0
          %703 = vmatmul.mubr.f32.gmra.mrb[0].mxu0 %v598
          %v704 = vpop.f32.mrb[0].mxu0
          %v705 = vadd.f32 0.0, %v704
          %v706 = vpop.f32.mrb[0].mxu0
          %707 = vmatprep.mubr.f32.mxu0 0.0
          %708 = vmatmul.mubr.f32.gmra.mrb[0].mxu0 %v599
          %v709 = vpop.f32.mrb[0].mxu0
          %v710 = vadd.f32 0.0, %v709
          %v711 = vpop.f32.mrb[0].mxu0
          %712 = vmatprep.mubr.f32.mxu0 0.0
          %713 = vmatmul.mubr.f32.gmra.mrb[0].mxu0 %v600
          %v714 = vpop.f32.mrb[0].mxu0
          %v715 = vadd.f32 0.0, %v714
          %v716 = vpop.f32.mrb[0].mxu0
          %717 = vmatprep.mubr.f32.mxu0 0.0
          %718 = vmatmul.mubr.f32.gmra.mrb[0].mxu0 %v601
          %v719 = vpop.f32.mrb[0].mxu0
          %v720 = vadd.f32 0.0, %v719
          %v721 = vpop.f32.mrb[0].mxu0
          %722 = vdwg.mxu0
          %v723 = vmul.f32 %v685, 0.22314355
          %v724 = vmul.f32 %v690, 0.22314355
          %v725 = vmul.f32 %v695, 0.22314355
          %v726 = vmul.f32 %v700, 0.22314355
          %v727 = vmul.f32 %v705, 0.22314355
          %v728 = vmul.f32 %v710, 0.22314355
          %v729 = vmul.f32 %v715, 0.22314355
          %v730 = vmul.f32 %v720, 0.22314355
          %v731 = vmul.f32 %v594, 0.7768564
          %v732 = vmul.f32 %v595, 0.7768564
          %v733 = vmul.f32 %v596, 0.7768564
          %v734 = vmul.f32 %v597, 0.7768564
          %v735 = vmul.f32 %v598, 0.7768564
          %v736 = vmul.f32 %v599, 0.7768564
          %v737 = vmul.f32 %v600, 0.7768564
          %v738 = vmul.f32 %v601, 0.7768564
          %v739 = vadd.f32 %v723, %v731
          %v740 = vadd.f32 %v724, %v732
          %v741 = vadd.f32 %v725, %v733
          %v742 = vadd.f32 %v726, %v734
          %v743 = vadd.f32 %v727, %v735
          %v744 = vadd.f32 %v728, %v736
          %v745 = vadd.f32 %v729, %v737
          %v746 = vadd.f32 %v730, %v738
          %v747 = vld [vmem:[%s346] sm:$0xff]
          %v748 = vld [vmem:[%s346 + $0x8] sm:$0xff]
          %v749 = vld [vmem:[%s346 + $0x10] sm:$0xff]
          %v750 = vld [vmem:[%s346 + $0x18] sm:$0xff]
          %v751 = vld [vmem:[%s346 + $0x20] sm:$0xff]
          %v752 = vld [vmem:[%s346 + $0x28] sm:$0xff]
          %v753 = vld [vmem:[%s346 + $0x30] sm:$0xff]
          %v754 = vld [vmem:[%s346 + $0x38] sm:$0xff]
          %v755 = vadd.f32 %v739, %v747
          %v756 = vadd.f32 %v740, %v748
          %v757 = vadd.f32 %v741, %v749
          %v758 = vadd.f32 %v742, %v750
          %v759 = vadd.f32 %v743, %v751
          %v760 = vadd.f32 %v744, %v752
          %v761 = vadd.f32 %v745, %v753
          %v762 = vadd.f32 %v746, %v754
          %763 = vst [vmem:[%s387] sm:$0xff] %v755
          %764 = vst [vmem:[%s387 + $0x8] sm:$0xff] %v756
          %765 = vst [vmem:[%s387 + $0x10] sm:$0xff] %v757
          %766 = vst [vmem:[%s387 + $0x18] sm:$0xff] %v758
          %767 = vst [vmem:[%s387 + $0x20] sm:$0xff] %v759
          %768 = vst [vmem:[%s387 + $0x28] sm:$0xff] %v760
          %769 = vst [vmem:[%s387 + $0x30] sm:$0xff] %v761
          %770 = vst [vmem:[%s387 + $0x38] sm:$0xff] %v762
        $region68: #{tpu_custom_call.1} parent=39 // pred_fallthru
          _
        %s771 = sand.u32 %s173, 1
        %s772 = scalar_lea.sflag [#allocation5], %s771
        %s773 = sand.u32 %s173, 1
        %s774 = smul.addr %s773, 64
        %s775 = scalar_lea.vmem [#allocation12], %s774
        // Predicated region
        $region69: #{tpu_custom_call.1} parent=39 // pred_check
          %p776 = pneg %p183
        $region70: #{tpu_custom_call.1} parent=39 // pred_check_branch
          %778 = sbr.rel (%p776) target = $region72
        $region71: #{tpu_custom_call.1} parent=39 // pred_region
          %s779 = smul.u32 8, %s30
          %s781 = ssub.s32 1024, 1024
          %782 = vsyncadd %s772, %s781
          %s783 = smul.addr %s779, 128
          %s784 = scalar_lea.hbm %s5, %s783
          %s785 = sshll.u32 %s775, 4
          %s786 = int_to_ptr.vmem [resolvable:$true] %s785
          %791 = dma.vmem_to_hbm [thread:$0]  %s786, 1024, %s784, %s772, 128, 128, 8
        $region72: #{tpu_custom_call.1} parent=39 // pred_fallthru
          _
      $region40: #{tpu_custom_call.1} parent=5 // pred_fallthru
        _
      %p792 = scmp.le.s32.totalorder 2, %s21
      // Predicated region
      $region73: #{tpu_custom_call.1} parent=5 // pred_check
        %p793 = pneg %p792
      $region74: #{tpu_custom_call.1} parent=5 // pred_check_branch
        %795 = sbr.rel (%p793) target = $region76
      $region75: #{tpu_custom_call.1} parent=5 // pred_region
        %s796 = ssub.s32 %s21, 2
        // Predicated region
        $region77: #{tpu_custom_call.1} parent=75 // pred_check
          %p797 = pneg %p189
        $region78: #{tpu_custom_call.1} parent=75 // pred_check_branch
          %799 = sbr.rel (%p797) target = $region80
        $region79: #{tpu_custom_call.1} parent=75 // pred_region
          %s800 = sand.u32 %s174, 1
          %s801 = scalar_lea.sflag [#allocation5], %s800
          %s802 = sand.u32 %s174, 1
          %s803 = smul.addr %s802, 64
          %s804 = scalar_lea.vmem [#allocation12], %s803
          %805 = dma.done %s801, 1024
        $region80: #{tpu_custom_call.1} parent=75 // pred_fallthru
          _
      $region76: #{tpu_custom_call.1} parent=5 // pred_fallthru
        _
    $region6: #{tpu_custom_call.1} parent=1 // loop_footer
      %s25 = sadd.s32 1, %s21
    $region7: #{tpu_custom_call.1} parent=1 // loop_footer_branch
      %20 = sbr.rel target = $region3
    $region8: #{tpu_custom_call.1} parent=1 // loop_exit
      _
    %806 = vsyncpa [#allocation4], 1
    %s807 = scalar_lea.sflag [#allocation4], 1
    %808 = vsyncpa %s807, 1
    %809 = vsyncpa [#allocation7], 1
    %s810 = scalar_lea.sflag [#allocation7], 1
    %811 = vsyncpa %s810, 1
    %812 = vsyncpa [#allocation10], 1
    %813 = vsyncpa [#allocation5], 1
    %s814 = scalar_lea.sflag [#allocation5], 1
    %815 = vsyncpa %s814, 1

</llo_original>
